<compile_context>
chip_gen: v7x
topology: tpu7x:2x2x1
jax: 0.10.0
libtpu: 0.0.40
codegen_flags: <defaults>
</compile_context>

<pallas_src>
import functools

import jax
import jax.numpy as jnp
from jax.experimental import pallas as pl
from jax.experimental.pallas import tpu as pltpu


def _lora_kernel(x_ref, wd_ref, wu_ref, o_ref, down_ref, *, scale, compute_dtype):
    # x_ref   : (tm, in_features)    activation block, native dtype (cast in-kernel, VPU)
    # wd_ref  : (in_features, rank)  pre-transposed down weight (grid-invariant)
    # wu_ref  : (rank, tn)           pre-transposed (lane-padded) up-weight column block
    # o_ref   : (tm, tn)             output block
    # down_ref: (tm, rank) f32       scratch, carried across the N ("arbitrary") axis
    j = pl.program_id(1)

    @pl.when(j == 0)
    def _():
        x = x_ref[...].astype(compute_dtype)
        d = jnp.dot(x, wd_ref[...], preferred_element_type=jnp.float32)  # (tm, rank)
        # Fold alpha/rank into the tiny (tm, rank) intermediate instead of the (tm, tn)
        # result: identical math, out_padded/rank fewer multiplies on the store path.
        down_ref[...] = d * scale

    up = jnp.dot(down_ref[...].astype(compute_dtype), wu_ref[...],
                 preferred_element_type=jnp.float32)                     # (tm, tn)
    o_ref[...] = up.astype(o_ref.dtype)


def _round_up(a, b):
    return pl.cdiv(a, b) * b


def _vmem_capacity_bytes():
    try:
        return int(pltpu.get_tpu_info().vmem_capacity_bytes)
    except Exception:
        return 64 * 1024 * 1024  # conservative default (v7x per-core VMEM)


def lora_linear(hidden_states, down_weight, up_weight, network_alpha=None,
                *, tm=256, tn_max=2048):
    """Pallas LoRA forward, matching LoRALinearLayer.forward.

    hidden_states: (..., in_features), any float dtype (cast in-kernel like torch).
    down_weight:   (rank, in_features)   -- nn.Linear weight layout
    up_weight:     (out_features, rank)  -- nn.Linear weight layout
    """
    orig_dtype = hidden_states.dtype
    w_dtype = down_weight.dtype
    rank, in_features = down_weight.shape
    out_features, rank_u = up_weight.shape
    assert rank_u == rank, "down/up rank mismatch"

    lead_shape = hidden_states.shape[:-1]
    x2d = hidden_states.reshape(-1, in_features)   # no astype / pad: one HBM read in-kernel
    M = x2d.shape[0]

    scale = 1.0 if network_alpha is None else float(network_alpha) / float(rank)

    x_bytes = jnp.dtype(x2d.dtype).itemsize
    o_bytes = jnp.dtype(orig_dtype).itemsize
    w_bytes = jnp.dtype(w_dtype).itemsize
    c_bytes = w_bytes  # compute dtype == weight dtype

    # dtype-aware minimum sublane tile for the M axis (f32->8, bf16->16, int8/fp8->32)
    sub = max(8, 32 // x_bytes)

    # lane-dense output: pad out_features up to a multiple of 128 (on the tiny weight only).
    # No-op (no pad, no trailing slice) when out_features is already 128-aligned.
    out_padded = _round_up(out_features, 128)
    tn = out_padded if out_padded <= tn_max else _round_up(tn_max, 128)
    out_padded = _round_up(out_padded, tn)         # keep N blocks exactly divisible

    # Pre-transpose the tiny weights once -> plain (M,K)x(K,N) contractions in-kernel,
    # no per-grid-step XLU transpose of the RHS.
    wd_t = down_weight.T                           # (in_features, rank)
    wu_t = up_weight.T                             # (rank, out_features)
    if out_padded != out_features:
        wu_t = jnp.pad(wu_t, ((0, 0), (0, out_padded - out_features)))

    # M tile: multiple of the sublane minimum, no larger than (rounded-up) M.
    tm_eff = max(sub, min(_round_up(tm, sub), _round_up(M, sub)))

    vmem_cap = _vmem_capacity_bytes()
    budget = int(0.75 * vmem_cap)                  # generation-aware block budget

    def _plan_bytes(t, n):
        blocks = (2 * t * in_features * x_bytes        # x block (double-buffered)
                  + 2 * t * n * o_bytes                # out block (double-buffered)
                  + 2 * in_features * rank * w_bytes   # down weight (<= 2 buffers)
                  + 2 * rank * n * w_bytes)            # up-weight column block
        scratch = t * rank * 4                         # f32 down scratch
        interm = (t * n * 4                            # f32 up result
                  + t * in_features * c_bytes          # in-kernel activation cast
                  + t * n * o_bytes)                   # store-side cast temporary
        return blocks + scratch + interm

    while tm_eff > sub and _plan_bytes(tm_eff, tn) > budget:
        tm_eff = max(sub, _round_up(tm_eff // 2, sub))
    while tn > 128 and _plan_bytes(tm_eff, tn) > budget:
        tn = max(128, _round_up(tn // 2, 128))
    # TODO(synk): if the plan still exceeds the budget at (sub, 128) (huge in_features),
    # a K-tiled (in_features) accumulation pass would be needed; proceed as-is otherwise.

    # v7x megacore: make sure the "parallel" M axis has >= 2 blocks whenever M allows it.
    while pl.cdiv(M, tm_eff) < 2 and tm_eff > sub:
        tm_eff = max(sub, _round_up(tm_eff // 2, sub))

    grid = (pl.cdiv(M, tm_eff), out_padded // tn)

    plan = _plan_bytes(tm_eff, tn)
    vmem_limit = int(min(vmem_cap, max(32 * 1024 * 1024, plan + 16 * 1024 * 1024)))

    flops = 2 * M * rank * (in_features + out_padded)
    bytes_accessed = (M * in_features * x_bytes
                      + M * out_padded * o_bytes
                      + in_features * rank * w_bytes
                      + rank * out_padded * w_bytes)

    # NOTE: scale / compute_dtype are baked in -> one compile per distinct
    # (alpha/rank, weight dtype); fine for a fixed LoRA, known cost when serving many.
    kernel = functools.partial(_lora_kernel, scale=scale, compute_dtype=w_dtype)

    def _call(buffer_weight_once):
        if buffer_weight_once:
            # grid-invariant block -> a single VMEM buffer is enough
            wd_spec = pl.BlockSpec((in_features, rank), lambda i, j: (0, 0),
                                   pipeline_mode=pl.Buffered(1))
        else:
            wd_spec = pl.BlockSpec((in_features, rank), lambda i, j: (0, 0))
        return pl.pallas_call(
            kernel,
            out_shape=jax.ShapeDtypeStruct((M, out_padded), orig_dtype),
            grid_spec=pltpu.PrefetchScalarGridSpec(
                num_scalar_prefetch=0,
                grid=grid,
                in_specs=[
                    pl.BlockSpec((tm_eff, in_features), lambda i, j: (i, 0)),
                    wd_spec,
                    pl.BlockSpec((rank, tn), lambda i, j: (0, j)),
                ],
                out_specs=pl.BlockSpec((tm_eff, tn), lambda i, j: (i, j)),
                scratch_shapes=[pltpu.VMEM((tm_eff, rank), jnp.float32)],
            ),
            compiler_params=pltpu.CompilerParams(
                # N axis is "arbitrary": the down scratch is carried across it.
                dimension_semantics=("parallel", "arbitrary"),
                vmem_limit_bytes=vmem_limit,
            ),
            cost_estimate=pl.CostEstimate(
                flops=int(flops), transcendentals=0,
                bytes_accessed=int(bytes_accessed)),
        )(x2d, wd_t, wu_t)

    try:
        out2d = _call(True)
    except Exception:
        # Fallback if this jax version rejects pipeline_mode=Buffered(1): identical
        # semantics, just one extra (tiny) VMEM buffer for the down weight.
        out2d = _call(False)

    if out_padded != out_features:
        out2d = out2d[:, :out_features]
    return out2d.reshape(*lead_shape, out_features)


def lora_linear_ref(hidden_states, down_weight, up_weight, network_alpha=None):
    """Pure-JAX reference matching the PyTorch forward."""
    orig_dtype = hidden_states.dtype
    dtype = down_weight.dtype
    down = hidden_states.astype(dtype) @ down_weight.T
    up = down @ up_weight.T
    if network_alpha is not None:
        up = up * (network_alpha / down_weight.shape[0])
    return up.astype(orig_dtype)


def _make_inputs(key, batch, seq, in_features, out_features, rank, dtype=jnp.float32):
    kx, kd, ku = jax.random.split(key, 3)
    # down: normal with std = 1/rank (matches nn.init.normal_(std=1/rank)); up is
    # zero-init in the module, use small random values so the check is non-trivial.
    down_weight = jax.random.normal(kd, (rank, in_features), dtype=dtype) * (1.0 / rank)
    up_weight = jax.random.normal(ku, (out_features, rank), dtype=dtype) * 0.02
    hidden_states = jax.random.normal(kx, (batch, seq, in_features), dtype=dtype)
    return hidden_states, down_weight, up_weight


if __name__ == "__main__":
    key = jax.random.PRNGKey(0)
    k1, k2 = jax.random.split(key)

    # Test 1: seq=7 -> M=14 exercises the masked M-boundary block; out=32 exercises the
    # lane-dense (pad-to-128) output path with a single N block.
    alpha1 = 8.0
    hs1, dw1, uw1 = _make_inputs(k1, batch=2, seq=7, in_features=32, out_features=32, rank=4)
    out1 = jax.block_until_ready(lora_linear(hs1, dw1, uw1, alpha1))
    ref1 = lora_linear_ref(hs1, dw1, uw1, alpha1)
    assert out1.shape == (2, 7, 32)
    assert out1.dtype == hs1.dtype
    assert jnp.allclose(out1, ref1, atol=1e-5, rtol=1e-5), "test 1 mismatch vs reference"

    # Test 2: tn_max=128 forces multiple N blocks (out=320 -> padded 384, 3 N tiles),
    # exercising the down-scratch carry across the "arbitrary" N axis + column slice.
    alpha2 = 16.0
    hs2, dw2, uw2 = _make_inputs(k2, batch=2, seq=5, in_features=64, out_features=320, rank=8)
    out2 = jax.block_until_ready(lora_linear(hs2, dw2, uw2, alpha2, tn_max=128))
    ref2 = lora_linear_ref(hs2, dw2, uw2, alpha2)
    assert out2.shape == (2, 5, 320)
    assert out2.dtype == hs2.dtype
    assert jnp.allclose(out2, ref2, atol=1e-5, rtol=1e-5), "test 2 mismatch vs reference"

    print("KERNEL_OK")
</pallas_src>

<mosaic_0001>
module attributes {stable_mosaic.version = 11 : i64} {
  func.func @_lora_kernel(%arg0: i32, %arg1: i32, %arg2: memref<8x32xf32, #tpu.memory_space<vmem>>, %arg3: memref<32x4xf32, #tpu.memory_space<vmem>>, %arg4: memref<4x128xf32, #tpu.memory_space<vmem>>, %arg5: memref<8x128xf32, #tpu.memory_space<vmem>>, %arg6: memref<8x4xf32, #tpu.memory_space<vmem>>) attributes {dimension_semantics = [#tpu.dimension_semantics<parallel>, #tpu.dimension_semantics<arbitrary>], iteration_bounds = array<i64: 2, 1>, scalar_prefetch = 0 : i64, scratch_operands = 1 : i64, tpu.core_type = #tpu.core_type<tc>, window_params = [{transform_indices = @transform_0, window_bounds = array<i64: 8, 32>}, {pipeline_mode = #tpu.pipeline_mode<synchronous>, transform_indices = @transform_1, window_bounds = array<i64: 32, 4>}, {transform_indices = @transform_2, window_bounds = array<i64: 4, 128>}, {transform_indices = @transform_3, window_bounds = array<i64: 8, 128>}]} {
    %c0_i32 = arith.constant 0 : i32
    %0 = arith.cmpi eq, %arg1, %c0_i32 : i32
    %1 = arith.extui %0 : i1 to i32
    %c0_i32_0 = arith.constant 0 : i32
    %2 = arith.cmpi ne, %1, %c0_i32_0 : i32
    scf.if %2 {
      %c0_6 = arith.constant 0 : index
      %c0_7 = arith.constant 0 : index
      %7 = vector.load %arg2[%c0_6, %c0_7] : memref<8x32xf32, #tpu.memory_space<vmem>>, vector<8x32xf32>
      %c0_8 = arith.constant 0 : index
      %c0_9 = arith.constant 0 : index
      %8 = vector.load %arg3[%c0_8, %c0_9] : memref<32x4xf32, #tpu.memory_space<vmem>>, vector<32x4xf32>
      %cst_10 = arith.constant dense<0.000000e+00> : vector<8x4xf32>
      %9 = tpu.matmul %7, %8, %cst_10 {dimension_numbers = #tpu.dot_dimension_numbers<[1], [0], [0], [1], [0, 0, 1, 1], [], []>} : vector<8x32xf32>, vector<32x4xf32>, vector<8x4xf32> -> vector<8x4xf32>
      %cst_11 = arith.constant 2.000000e+00 : f32
      %10 = vector.broadcast %cst_11 : f32 to vector<8x4xf32>
      %11 = arith.mulf %9, %10 : vector<8x4xf32>
      %c0_12 = arith.constant 0 : index
      %c0_13 = arith.constant 0 : index
      %12 = vector.load %arg6[%c0_12, %c0_13] : memref<8x4xf32, #tpu.memory_space<vmem>>, vector<8x4xf32>
      tpu.vector_store %arg6[%c0_12, %c0_13], %11 {strides = array<i32>} : memref<8x4xf32, #tpu.memory_space<vmem>>, vector<8x4xf32>,
    } else {
    }
    %c0 = arith.constant 0 : index
    %c0_1 = arith.constant 0 : index
    %3 = vector.load %arg6[%c0, %c0_1] : memref<8x4xf32, #tpu.memory_space<vmem>>, vector<8x4xf32>
    %c0_2 = arith.constant 0 : index
    %c0_3 = arith.constant 0 : index
    %4 = vector.load %arg4[%c0_2, %c0_3] : memref<4x128xf32, #tpu.memory_space<vmem>>, vector<4x128xf32>
    %cst = arith.constant dense<0.000000e+00> : vector<8x128xf32>
    %5 = tpu.matmul %3, %4, %cst {dimension_numbers = #tpu.dot_dimension_numbers<[1], [0], [0], [1], [0, 0, 1, 1], [], []>} : vector<8x4xf32>, vector<4x128xf32>, vector<8x128xf32> -> vector<8x128xf32>
    %c0_4 = arith.constant 0 : index
    %c0_5 = arith.constant 0 : index
    %6 = vector.load %arg5[%c0_4, %c0_5] : memref<8x128xf32, #tpu.memory_space<vmem>>, vector<8x128xf32>
    tpu.vector_store %arg5[%c0_4, %c0_5], %5 {strides = array<i32>} : memref<8x128xf32, #tpu.memory_space<vmem>>, vector<8x128xf32>,
    return
  }
  func.func @transform_0(%arg0: i32, %arg1: i32) -> (i32, i32) {
    %c0_i32 = arith.constant 0 : i32
    %c0_i32_0 = arith.constant 0 : i32
    return %arg0, %c0_i32 : i32, i32
  }
  func.func @transform_1(%arg0: i32, %arg1: i32) -> (i32, i32) {
    %c0_i32 = arith.constant 0 : i32
    %c0_i32_0 = arith.constant 0 : i32
    %c0_i32_1 = arith.constant 0 : i32
    return %c0_i32, %c0_i32_0 : i32, i32
  }
  func.func @transform_2(%arg0: i32, %arg1: i32) -> (i32, i32) {
    %c0_i32 = arith.constant 0 : i32
    %c0_i32_0 = arith.constant 0 : i32
    return %c0_i32, %arg1 : i32, i32
  }
  func.func @transform_3(%arg0: i32, %arg1: i32) -> (i32, i32) {
    %c0_i32 = arith.constant 0 : i32
    return %arg0, %arg1 : i32, i32
  }
}

module attributes {stable_mosaic.version = 11 : i64} {
  func.func @_lora_kernel(%arg0: i32, %arg1: i32, %arg2: memref<8x32xf32, #tpu.memory_space<vmem>>, %arg3: memref<32x4xf32, #tpu.memory_space<vmem>>, %arg4: memref<4x128xf32, #tpu.memory_space<vmem>>, %arg5: memref<8x128xf32, #tpu.memory_space<vmem>>, %arg6: memref<8x4xf32, #tpu.memory_space<vmem>>) attributes {dimension_semantics = [#tpu.dimension_semantics<parallel>, #tpu.dimension_semantics<arbitrary>], iteration_bounds = array<i64: 2, 1>, scalar_prefetch = 0 : i64, scratch_operands = 1 : i64, tpu.core_type = #tpu.core_type<tc>, window_params = [{transform_indices = @transform_0, window_bounds = array<i64: 8, 32>}, {pipeline_mode = #tpu.pipeline_mode<synchronous>, transform_indices = @transform_1, window_bounds = array<i64: 32, 4>}, {transform_indices = @transform_2, window_bounds = array<i64: 4, 128>}, {transform_indices = @transform_3, window_bounds = array<i64: 8, 128>}]} {
    %c0_i32 = arith.constant 0 : i32
    %0 = arith.cmpi eq, %arg1, %c0_i32 : i32
    %1 = arith.extui %0 : i1 to i32
    %c0_i32_0 = arith.constant 0 : i32
    %2 = arith.cmpi ne, %1, %c0_i32_0 : i32
    scf.if %2 {
      %c0_6 = arith.constant 0 : index
      %c0_7 = arith.constant 0 : index
      %7 = vector.load %arg2[%c0_6, %c0_7] : memref<8x32xf32, #tpu.memory_space<vmem>>, vector<8x32xf32>
      %c0_8 = arith.constant 0 : index
      %c0_9 = arith.constant 0 : index
      %8 = vector.load %arg3[%c0_8, %c0_9] : memref<32x4xf32, #tpu.memory_space<vmem>>, vector<32x4xf32>
      %cst_10 = arith.constant dense<0.000000e+00> : vector<8x4xf32>
      %9 = tpu.matmul %7, %8, %cst_10 {dimension_numbers = #tpu.dot_dimension_numbers<[1], [0], [0], [1], [0, 0, 1, 1], [], []>} : vector<8x32xf32>, vector<32x4xf32>, vector<8x4xf32> -> vector<8x4xf32>
      %cst_11 = arith.constant 2.000000e+00 : f32
      %10 = vector.broadcast %cst_11 : f32 to vector<8x4xf32>
      %11 = arith.mulf %9, %10 : vector<8x4xf32>
      %c0_12 = arith.constant 0 : index
      %c0_13 = arith.constant 0 : index
      %12 = vector.load %arg6[%c0_12, %c0_13] : memref<8x4xf32, #tpu.memory_space<vmem>>, vector<8x4xf32>
      tpu.vector_store %arg6[%c0_12, %c0_13], %11 {strides = array<i32>} : memref<8x4xf32, #tpu.memory_space<vmem>>, vector<8x4xf32>,
    } else {
    }
    %c0 = arith.constant 0 : index
    %c0_1 = arith.constant 0 : index
    %3 = vector.load %arg6[%c0, %c0_1] : memref<8x4xf32, #tpu.memory_space<vmem>>, vector<8x4xf32>
    %c0_2 = arith.constant 0 : index
    %c0_3 = arith.constant 0 : index
    %4 = vector.load %arg4[%c0_2, %c0_3] : memref<4x128xf32, #tpu.memory_space<vmem>>, vector<4x128xf32>
    %cst = arith.constant dense<0.000000e+00> : vector<8x128xf32>
    %5 = tpu.matmul %3, %4, %cst {dimension_numbers = #tpu.dot_dimension_numbers<[1], [0], [0], [1], [0, 0, 1, 1], [], []>} : vector<8x4xf32>, vector<4x128xf32>, vector<8x128xf32> -> vector<8x128xf32>
    %c0_4 = arith.constant 0 : index
    %c0_5 = arith.constant 0 : index
    %6 = vector.load %arg5[%c0_4, %c0_5] : memref<8x128xf32, #tpu.memory_space<vmem>>, vector<8x128xf32>
    tpu.vector_store %arg5[%c0_4, %c0_5], %5 {strides = array<i32>} : memref<8x128xf32, #tpu.memory_space<vmem>>, vector<8x128xf32>,
    return
  }
  func.func @transform_0(%arg0: i32, %arg1: i32) -> (i32, i32) {
    %c0_i32 = arith.constant 0 : i32
    %c0_i32_0 = arith.constant 0 : i32
    return %arg0, %c0_i32 : i32, i32
  }
  func.func @transform_1(%arg0: i32, %arg1: i32) -> (i32, i32) {
    %c0_i32 = arith.constant 0 : i32
    %c0_i32_0 = arith.constant 0 : i32
    %c0_i32_1 = arith.constant 0 : i32
    return %c0_i32, %c0_i32_0 : i32, i32
  }
  func.func @transform_2(%arg0: i32, %arg1: i32) -> (i32, i32) {
    %c0_i32 = arith.constant 0 : i32
    %c0_i32_0 = arith.constant 0 : i32
    return %c0_i32, %arg1 : i32, i32
  }
  func.func @transform_3(%arg0: i32, %arg1: i32) -> (i32, i32) {
    %c0_i32 = arith.constant 0 : i32
    return %arg0, %arg1 : i32, i32
  }
}

</mosaic_0001>

<llo_original>
// kernel: tpu_custom_call.1
$region0: #{tpu_custom_call.1}
  #allocation0 [shape = 'u32[]', space=smem, size = 0x4, offset = 0x4, fixed_abs, tag = 'smem constant byte address 0x4 - core index']
  #allocation1 [shape = 'u32[144,128]{1,0:T(1,128)}', space=vmem, size = 0x12000, scoped, tag = 'internal scratch']
  #allocation2 [shape = 'f32[8,4]{1,0:T(8,128)}', space=vmem, size = 0x1000, scoped, tag = 'scratch operand']
  %s0 = inlined_call_operand.vmem [shape: f32[14,32], index: 0, kind: input, shape index: {}]
  %s1 = inlined_call_operand.vmem [shape: f32[32,4], index: 1, kind: input, shape index: {}]
  %s2 = inlined_call_operand.vmem [shape: f32[4,128], index: 2, kind: input, shape index: {}]
  %s3 = inlined_call_operand.hbm [shape: f32[14,128], index: 3, kind: output, shape index: {}]
  %s4 = sld [smem:[#allocation0]]
  $region49: #{tpu_custom_call.1} parent=0
    _
  %s6 = ssub.s32 1, %s4
  %s7 = scalar_select 0, %s6, %s4
  $region1: #{tpu_custom_call.1} parent=0
    #allocation3 [shape = 'u8[8192]{0}', space=vmem, size = 0x2000, scoped, tag = 'output window, operand 0']
    #allocation4 [shape = 's32[2]{0}', space=sflag, size = 0x8, scoped, tag = 'scoped memory for tpu_custom_call.1']
    %8 = vsyncpa [#allocation4], 0
    %s9 = scalar_lea.sflag [#allocation4], 1
    %10 = vsyncpa %s9, 0
    loop: start=0, step=1, limit=4
    $region2: #{tpu_custom_call.1} parent=1 // loop_pre_header
      _
    $region3: #{tpu_custom_call.1} parent=1 // loop_header
      %s12 = sphi 0, %s16
      %p13 = scmp.ge.s32.totalorder %s12, 4
      %s19 = sphi 0, %s31
      %s20 = sphi 0, %s27
      %s21 = sphi 0, %s19
      %s22 = sphi 0, %s20
      %s23 = sphi 0, %s21
      %s24 = sphi 0, %s22
      %s34 = sphi 0, %s36
      %s37 = sphi 0, %s34
      %s38 = sphi 0, %s37
      %s54 = sphi 0, %s38
      %s58 = sphi 0, %s58
      %s60 = sphi 0, %s58
      %s61 = sphi 0, %s60
      %s75 = sphi 0, %s61
      %s81 = sphi 0, %s83
      %s84 = sphi 0, %s81
      %s85 = sphi 0, %s84
      %s101 = sphi 0, %s85
      %s109 = sphi 0, %s111
      %s112 = sphi 0, %s109
      %s113 = sphi 0, %s112
      %s129 = sphi 0, %s113
    $region4: #{tpu_custom_call.1} parent=1 // loop_header_branch
      %15 = sbr.rel (%p13) target = $region8
    $region5: #{tpu_custom_call.1} parent=1 // loop_body
      %s17 = ssub.s32 %s12, 1
      %s18 = ssub.s32 %s12, 2
      %s25 = sadd.s32 1, %s20
      %p26 = scmp.ge.s32.totalorder %s25, 1
      %s27 = scalar_select %p26, 0, %s25
      %s28 = sadd.s32 1, %s19
      %s29 = scalar_select %p26, %s28, %s19
      %p30 = scmp.ge.s32.totalorder %s29, 2
      %s31 = scalar_select %p30, 0, %s29
      %s32 = ssub.s32 %s19, %s31
      %p33 = scmp.eq.s32.totalorder %s32, 0
      %s35 = sadd.s32 %s34, 1
      %s36 = scalar_select %p33, %s34, %s35
      %p39 = pneg %p33
      %p40 = scmp.eq.s32.totalorder %s12, 1
      %p41 = por %p39, %p40
      %p42 = scmp.ne.s32.totalorder %s34, %s37
      %p43 = scmp.eq.s32.totalorder %s12, 0
      %p44 = por %p42, %p43
      %p45 = scmp.ne.s32.totalorder %s34, %s37
      %p46 = scmp.eq.s32.totalorder %s17, 1
      %p47 = por %p45, %p46
      %p48 = scmp.ne.s32.totalorder %s37, %s38
      %p49 = scmp.eq.s32.totalorder %s17, 0
      %p50 = por %p48, %p49
      %p51 = scmp.ne.s32.totalorder %s37, %s38
      %p52 = scmp.eq.s32.totalorder %s18, 1
      %p53 = por %p51, %p52
      %p55 = scmp.ne.s32.totalorder %s38, %s54
      %p56 = scmp.eq.s32.totalorder %s18, 0
      %p57 = por %p55, %p56
      %s59 = sadd.s32 %s58, 1
      %p62 = scmp.eq.s32.totalorder %s12, 1
      %p63 = scmp.ne.s32.totalorder %s58, %s60
      %p64 = scmp.eq.s32.totalorder %s12, 0
      %p65 = por %p63, %p64
      %p66 = scmp.ne.s32.totalorder %s58, %s60
      %p67 = scmp.eq.s32.totalorder %s17, 1
      %p68 = por %p66, %p67
      %p69 = scmp.ne.s32.totalorder %s60, %s61
      %p70 = scmp.eq.s32.totalorder %s17, 0
      %p71 = por %p69, %p70
      %p72 = scmp.ne.s32.totalorder %s60, %s61
      %p73 = scmp.eq.s32.totalorder %s18, 1
      %p74 = por %p72, %p73
      %p76 = scmp.ne.s32.totalorder %s61, %s75
      %p77 = scmp.eq.s32.totalorder %s18, 0
      %p78 = por %p76, %p77
      %s79 = ssub.s32 %s20, %s27
      %p80 = scmp.eq.s32.totalorder %s79, 0
      %s82 = sadd.s32 %s81, 1
      %s83 = scalar_select %p80, %s81, %s82
      %p86 = pneg %p80
      %p87 = scmp.eq.s32.totalorder %s12, 1
      %p88 = por %p86, %p87
      %p89 = scmp.ne.s32.totalorder %s81, %s84
      %p90 = scmp.eq.s32.totalorder %s12, 0
      %p91 = por %p89, %p90
      %p92 = scmp.ne.s32.totalorder %s81, %s84
      %p93 = scmp.eq.s32.totalorder %s17, 1
      %p94 = por %p92, %p93
      %p95 = scmp.ne.s32.totalorder %s84, %s85
      %p96 = scmp.eq.s32.totalorder %s17, 0
      %p97 = por %p95, %p96
      %p98 = scmp.ne.s32.totalorder %s84, %s85
      %p99 = scmp.eq.s32.totalorder %s18, 1
      %p100 = por %p98, %p99
      %p102 = scmp.ne.s32.totalorder %s85, %s101
      %p103 = scmp.eq.s32.totalorder %s18, 0
      %p104 = por %p102, %p103
      %s105 = ssub.s32 %s19, %s31
      %s106 = ssub.s32 %s20, %s27
      %s107 = sor.u32 %s105, %s106
      %p108 = scmp.eq.s32.totalorder %s107, 0
      %s110 = sadd.s32 %s109, 1
      %s111 = scalar_select %p108, %s109, %s110
      %p114 = pneg %p108
      %p115 = scmp.eq.s32.totalorder %s12, 1
      %p116 = por %p114, %p115
      %p117 = scmp.ne.s32.totalorder %s109, %s112
      %p118 = scmp.eq.s32.totalorder %s12, 0
      %p119 = por %p117, %p118
      %p120 = scmp.ne.s32.totalorder %s109, %s112
      %p121 = scmp.eq.s32.totalorder %s17, 1
      %p122 = por %p120, %p121
      %p123 = scmp.ne.s32.totalorder %s112, %s113
      %p124 = scmp.eq.s32.totalorder %s17, 0
      %p125 = por %p123, %p124
      %p126 = scmp.ne.s32.totalorder %s112, %s113
      %p127 = scmp.eq.s32.totalorder %s18, 1
      %p128 = por %p126, %p127
      %p130 = scmp.ne.s32.totalorder %s113, %s129
      %p131 = scmp.eq.s32.totalorder %s18, 0
      %p132 = por %p130, %p131
      %p133 = scmp.le.s32.totalorder 1, %s12
      %p134 = scmp.lt.s32.totalorder %s12, 3
      %p135 = pnand %p133, %p134
      %p136 = pneg %p135
      // Predicated region
      $region9: #{tpu_custom_call.1} parent=5 // pred_check
        _
      $region10: #{tpu_custom_call.1} parent=5 // pred_check_branch
        %138 = sbr.rel (%p135) target = $region12
      $region11: #{tpu_custom_call.1} parent=5 // pred_region
        %s139 = ssub.s32 %s12, 1
        // Predicated region
        $region13: #{tpu_custom_call.1} parent=11 // pred_check
          %p140 = pneg %p71
        $region14: #{tpu_custom_call.1} parent=11 // pred_check_branch
          %142 = sbr.rel (%p140) target = $region16
        $region15: #{tpu_custom_call.1} parent=11 // pred_region
          _
        $region16: #{tpu_custom_call.1} parent=11 // pred_fallthru
          _
        // Predicated region
        $region17: #{tpu_custom_call.1} parent=11 // pred_check
          %p143 = pneg %p97
        $region18: #{tpu_custom_call.1} parent=11 // pred_check_branch
          %145 = sbr.rel (%p143) target = $region20
        $region19: #{tpu_custom_call.1} parent=11 // pred_region
          %p146 = scmp.lt.s32.totalorder %s22, 0
          %s147 = scalar_select %p146, %s22, 0
          %s148 = smul.addr %s147, 4
          %s149 = scalar_lea.vmem %s2, %s148
        $region20: #{tpu_custom_call.1} parent=11 // pred_fallthru
          _
      $region12: #{tpu_custom_call.1} parent=5 // pred_fallthru
        _
      %p150 = scmp.lt.s32.totalorder %s12, 2
      // Predicated region
      $region21: #{tpu_custom_call.1} parent=5 // pred_check
        %p151 = pneg %p150
      $region22: #{tpu_custom_call.1} parent=5 // pred_check_branch
        %153 = sbr.rel (%p151) target = $region24
      $region23: #{tpu_custom_call.1} parent=5 // pred_region
        // Predicated region
        $region25: #{tpu_custom_call.1} parent=23 // pred_check
          %p154 = pneg %p44
        $region26: #{tpu_custom_call.1} parent=23 // pred_check_branch
          %156 = sbr.rel (%p154) target = $region28
        $region27: #{tpu_custom_call.1} parent=23 // pred_region
          %p157 = scmp.lt.s32.totalorder %s19, 1
          %s158 = scalar_select %p157, %s19, 1
          %s159 = smul.addr %s158, 8
          %s160 = scalar_lea.vmem %s0, %s159
        $region28: #{tpu_custom_call.1} parent=23 // pred_fallthru
          _
      $region24: #{tpu_custom_call.1} parent=5 // pred_fallthru
        _
      %p161 = scmp.le.s32.totalorder 1, %s12
      %p162 = scmp.lt.s32.totalorder %s12, 3
      %p163 = pnand %p161, %p162
      %p164 = pneg %p163
      // Predicated region
      $region29: #{tpu_custom_call.1} parent=5 // pred_check
        _
      $region30: #{tpu_custom_call.1} parent=5 // pred_check_branch
        %166 = sbr.rel (%p163) target = $region32
      $region31: #{tpu_custom_call.1} parent=5 // pred_region
        %s167 = ssub.s32 %s12, 1
        %p168 = scmp.lt.s32.totalorder %s21, 1
        %s169 = scalar_select %p168, %s21, 1
        %s170 = smul.addr %s169, 8
        %s171 = scalar_lea.vmem %s0, %s170
        %p172 = pneg %p50
        %p173 = pneg %p47
        %p174 = pneg %p71
        %p175 = pneg %p68
        %p176 = scmp.lt.s32.totalorder %s22, 0
        %s177 = scalar_select %p176, %s22, 0
        %s178 = smul.addr %s177, 4
        %s179 = scalar_lea.vmem %s2, %s178
        %p180 = pneg %p97
        %p181 = pneg %p94
        %p182 = pneg %p125
        %p183 = pneg %p122
        %s184 = sand.u32 %s112, 1
        %s185 = scalar_lea.sflag [#allocation4], %s184
        %s186 = sand.u32 %s112, 1
        %s187 = smul.addr %s186, 8
        %s188 = scalar_lea.vmem [#allocation3], %s187
        %p189 = scmp.lt.s32.totalorder %s21, 1
        %s190 = scalar_select %p189, %s21, 1
        %s191 = smul.addr %s190, 8
        %s192 = scalar_lea.vmem %s0, %s191
        %p193 = scmp.lt.s32.totalorder %s22, 0
        %s194 = scalar_select %p193, %s22, 0
        %s195 = smul.addr %s194, 4
        %s196 = scalar_lea.vmem %s2, %s195
        %p197 = scmp.eq.s32.totalorder %s22, 0
        // Predicated region
        $region33: #{tpu_custom_call.1} parent=31 // pred_check
          %p198 = pneg %p197
        $region34: #{tpu_custom_call.1} parent=31 // pred_check_branch
          %200 = sbr.rel (%p198) target = $region36
        $region35: #{tpu_custom_call.1} parent=31 // pred_region
          %v201 = vld [vmem:[%s192] sm:$0xff]
          %v202 = vld [vmem:[%s1] sm:$0xff]
          %v203 = vld [vmem:[%s1 + $0x8] sm:$0xff]
          %v204 = vld [vmem:[%s1 + $0x10] sm:$0xff]
          %v205 = vld [vmem:[%s1 + $0x18] sm:$0xff]
          %vm206 = vcmask 261120
          %v208 = vsel %vm206, %v201, 0
          %210 = vmatprep.subr.mxu0 0.0
          %211 = vmatpush1.msra.mxu0 %v202
          %212 = vmatprep.subr.mxu0 0.0
          %213 = vmatpush1.msra.mxu0 %v203
          %214 = vmatprep.subr.mxu0 0.0
          %215 = vmatpush1.msra.mxu0 %v204
          %216 = vmatprep.subr.mxu0 0.0
          %217 = vmatpush1.msra.mxu0 %v205
          %218 = vmatprep.subr.mxu0 0.0
          %219 = vmatpush1.msra.mxu0 0.0
          %220 = vmatprep.subr.mxu0 0.0
          %221 = vmatpush1.msra.mxu0 0.0
          %222 = vmatprep.subr.mxu0 0.0
          %223 = vmatpush1.msra.mxu0 0.0
          %224 = vmatprep.subr.mxu0 0.0
          %225 = vmatpush1.msra.mxu0 0.0
          %226 = vmatprep.subr.mxu0 0.0
          %227 = vmatpush1.msra.mxu0 0.0
          %228 = vmatprep.subr.mxu0 0.0
          %229 = vmatpush1.msra.mxu0 0.0
          %230 = vmatprep.subr.mxu0 0.0
          %231 = vmatpush1.msra.mxu0 0.0
          %232 = vmatprep.subr.mxu0 0.0
          %233 = vmatpush1.msra.mxu0 0.0
          %234 = vmatprep.subr.mxu0 0.0
          %235 = vmatpush1.msra.mxu0 0.0
          %236 = vmatprep.subr.mxu0 0.0
          %237 = vmatpush1.msra.mxu0 0.0
          %238 = vmatprep.subr.mxu0 0.0
          %239 = vmatpush1.msra.mxu0 0.0
          %240 = vmatprep.subr.mxu0 0.0
          %241 = vmatpush1.msra.mxu0 0.0
          %242 = vmatprep.subr.mxu0 0.0
          %243 = vmatpush1.msra.mxu0 0.0
          %244 = vmatprep.subr.mxu0 0.0
          %245 = vmatpush1.msra.mxu0 0.0
          %246 = vmatprep.subr.mxu0 0.0
          %247 = vmatpush1.msra.mxu0 0.0
          %248 = vmatprep.subr.mxu0 0.0
          %249 = vmatpush1.msra.mxu0 0.0
          %250 = vmatprep.subr.mxu0 0.0
          %251 = vmatpush1.msra.mxu0 0.0
          %252 = vmatprep.subr.mxu0 0.0
          %253 = vmatpush1.msra.mxu0 0.0
          %254 = vmatprep.subr.mxu0 0.0
          %255 = vmatpush1.msra.mxu0 0.0
          %256 = vmatprep.subr.mxu0 0.0
          %257 = vmatpush1.msra.mxu0 0.0
          %258 = vmatprep.subr.mxu0 0.0
          %259 = vmatpush1.msra.mxu0 0.0
          %260 = vmatprep.subr.mxu0 0.0
          %261 = vmatpush1.msra.mxu0 0.0
          %262 = vmatprep.subr.mxu0 0.0
          %263 = vmatpush1.msra.mxu0 0.0
          %264 = vmatprep.subr.mxu0 0.0
          %265 = vmatpush1.msra.mxu0 0.0
          %266 = vmatprep.subr.mxu0 0.0
          %267 = vmatpush1.msra.mxu0 0.0
          %268 = vmatprep.subr.mxu0 0.0
          %269 = vmatpush1.msra.mxu0 0.0
          %270 = vmatprep.subr.mxu0 0.0
          %271 = vmatpush1.msra.mxu0 0.0
          %272 = vmatprep.subr.mxu0 0.0
          %273 = vmatpush1.msra.mxu0 0.0
          %274 = vmatprep.mubr.f32.mxu0 0.0
          %275 = vmatmul.mubr.f32.gmra.mrb[0].mxu0 %v208
          %v276 = vpop.f32.mrb[0].mxu0
          %v277 = vadd.f32 0.0, %v276
          %v278 = vpop.f32.mrb[0].mxu0
          %279 = vdwg.mxu0
          %v280 = vmul.f32 %v277, 2.0
          %vm281 = vcmask 31744
          %282 = vst.msk [vmem:[#allocation2] sm:$0xff] %vm281, %v280
        $region36: #{tpu_custom_call.1} parent=31 // pred_fallthru
          _
        %v283 = vld [vmem:[#allocation2] sm:$0xff]
        %v284 = vld [vmem:[%s196] sm:$0xf]
        %vm285 = vcmask 31744
        %v287 = vsel %vm285, %v283, 0
        %vm289 = vcmask 1043456
        %v291 = vsel %vm289, %v284, 0
        %293 = vmatprep.subr.mxu0 0.0
        %294 = vmatpush1.msra.mxu0 %v291
        %295 = vmatprep.subr.mxu0 0.0
        %296 = vmatpush1.msra.mxu0 0.0
        %297 = vmatprep.subr.mxu0 0.0
        %298 = vmatpush1.msra.mxu0 0.0
        %299 = vmatprep.subr.mxu0 0.0
        %300 = vmatpush1.msra.mxu0 0.0
        %301 = vmatprep.subr.mxu0 0.0
        %302 = vmatpush1.msra.mxu0 0.0
        %303 = vmatprep.subr.mxu0 0.0
        %304 = vmatpush1.msra.mxu0 0.0
        %305 = vmatprep.subr.mxu0 0.0
        %306 = vmatpush1.msra.mxu0 0.0
        %307 = vmatprep.subr.mxu0 0.0
        %308 = vmatpush1.msra.mxu0 0.0
        %309 = vmatprep.subr.mxu0 0.0
        %310 = vmatpush1.msra.mxu0 0.0
        %311 = vmatprep.subr.mxu0 0.0
        %312 = vmatpush1.msra.mxu0 0.0
        %313 = vmatprep.subr.mxu0 0.0
        %314 = vmatpush1.msra.mxu0 0.0
        %315 = vmatprep.subr.mxu0 0.0
        %316 = vmatpush1.msra.mxu0 0.0
        %317 = vmatprep.subr.mxu0 0.0
        %318 = vmatpush1.msra.mxu0 0.0
        %319 = vmatprep.subr.mxu0 0.0
        %320 = vmatpush1.msra.mxu0 0.0
        %321 = vmatprep.subr.mxu0 0.0
        %322 = vmatpush1.msra.mxu0 0.0
        %323 = vmatprep.subr.mxu0 0.0
        %324 = vmatpush1.msra.mxu0 0.0
        %325 = vmatprep.subr.mxu0 0.0
        %326 = vmatpush1.msra.mxu0 0.0
        %327 = vmatprep.subr.mxu0 0.0
        %328 = vmatpush1.msra.mxu0 0.0
        %329 = vmatprep.subr.mxu0 0.0
        %330 = vmatpush1.msra.mxu0 0.0
        %331 = vmatprep.subr.mxu0 0.0
        %332 = vmatpush1.msra.mxu0 0.0
        %333 = vmatprep.subr.mxu0 0.0
        %334 = vmatpush1.msra.mxu0 0.0
        %335 = vmatprep.subr.mxu0 0.0
        %336 = vmatpush1.msra.mxu0 0.0
        %337 = vmatprep.subr.mxu0 0.0
        %338 = vmatpush1.msra.mxu0 0.0
        %339 = vmatprep.subr.mxu0 0.0
        %340 = vmatpush1.msra.mxu0 0.0
        %341 = vmatprep.subr.mxu0 0.0
        %342 = vmatpush1.msra.mxu0 0.0
        %343 = vmatprep.subr.mxu0 0.0
        %344 = vmatpush1.msra.mxu0 0.0
        %345 = vmatprep.subr.mxu0 0.0
        %346 = vmatpush1.msra.mxu0 0.0
        %347 = vmatprep.subr.mxu0 0.0
        %348 = vmatpush1.msra.mxu0 0.0
        %349 = vmatprep.subr.mxu0 0.0
        %350 = vmatpush1.msra.mxu0 0.0
        %351 = vmatprep.subr.mxu0 0.0
        %352 = vmatpush1.msra.mxu0 0.0
        %353 = vmatprep.subr.mxu0 0.0
        %354 = vmatpush1.msra.mxu0 0.0
        %355 = vmatprep.subr.mxu0 0.0
        %356 = vmatpush1.msra.mxu0 0.0
        %357 = vmatprep.mubr.f32.mxu0 0.0
        %358 = vmatmul.mubr.f32.gmra.mrb[0].mxu0 %v287
        %v359 = vpop.f32.mrb[0].mxu0
        %v360 = vadd.f32 0.0, %v359
        %v361 = vpop.f32.mrb[0].mxu0
        %362 = vdwg.mxu0
        %363 = vst [vmem:[%s188] sm:$0xff] %v360
        %s364 = sand.u32 %s112, 1
        %s365 = scalar_lea.sflag [#allocation4], %s364
        %s366 = sand.u32 %s112, 1
        %s367 = smul.addr %s366, 8
        %s368 = scalar_lea.vmem [#allocation3], %s367
        // Predicated region
        $region37: #{tpu_custom_call.1} parent=31 // pred_check
          %p369 = pneg %p122
        $region38: #{tpu_custom_call.1} parent=31 // pred_check_branch
          %371 = sbr.rel (%p369) target = $region40
        $region39: #{tpu_custom_call.1} parent=31 // pred_region
          %s373 = ssub.s32 128, 128
          %374 = vsyncadd %s365, %s373
          %s375 = sadd.s32 %s22, %s21
          %s376 = smul.addr %s375, 128
          %s377 = scalar_lea.hbm %s3, %s376
          %s379 = sshll.u32 %s368, 4
          %s380 = int_to_ptr.vmem [resolvable:$true] %s379
          %382 = dma.vmem_to_hbm [thread:$0]  %s380, 128, %s377, %s365
        $region40: #{tpu_custom_call.1} parent=31 // pred_fallthru
          _
      $region32: #{tpu_custom_call.1} parent=5 // pred_fallthru
        _
      %p383 = scmp.le.s32.totalorder 2, %s12
      // Predicated region
      $region41: #{tpu_custom_call.1} parent=5 // pred_check
        %p384 = pneg %p383
      $region42: #{tpu_custom_call.1} parent=5 // pred_check_branch
        %386 = sbr.rel (%p384) target = $region44
      $region43: #{tpu_custom_call.1} parent=5 // pred_region
        %s387 = ssub.s32 %s12, 2
        // Predicated region
        $region45: #{tpu_custom_call.1} parent=43 // pred_check
          %p388 = pneg %p128
        $region46: #{tpu_custom_call.1} parent=43 // pred_check_branch
          %390 = sbr.rel (%p388) target = $region48
        $region47: #{tpu_custom_call.1} parent=43 // pred_region
          %s391 = sand.u32 %s113, 1
          %s392 = scalar_lea.sflag [#allocation4], %s391
          %s393 = sand.u32 %s113, 1
          %s394 = smul.addr %s393, 8
          %s395 = scalar_lea.vmem [#allocation3], %s394
          %396 = dma.done %s392, 128
        $region48: #{tpu_custom_call.1} parent=43 // pred_fallthru
          _
      $region44: #{tpu_custom_call.1} parent=5 // pred_fallthru
        _
    $region6: #{tpu_custom_call.1} parent=1 // loop_footer
      %s16 = sadd.s32 1, %s12
    $region7: #{tpu_custom_call.1} parent=1 // loop_footer_branch
      %11 = sbr.rel target = $region3
    $region8: #{tpu_custom_call.1} parent=1 // loop_exit
      _
    %397 = vsyncpa [#allocation4], 1
    %s398 = scalar_lea.sflag [#allocation4], 1
    %399 = vsyncpa %s398, 1

// kernel: tpu_custom_call.1
$region0: #{tpu_custom_call.1}
  #allocation0 [shape = 'u32[]', space=smem, size = 0x4, offset = 0x4, fixed_abs, tag = 'smem constant byte address 0x4 - core index']
  #allocation1 [shape = 'u32[144,128]{1,0:T(1,128)}', space=vmem, size = 0x12000, scoped, tag = 'internal scratch']
  #allocation2 [shape = 'f32[8,4]{1,0:T(8,128)}', space=vmem, size = 0x1000, scoped, tag = 'scratch operand']
  %s0 = inlined_call_operand.vmem [shape: f32[14,32], index: 0, kind: input, shape index: {}]
  %s1 = inlined_call_operand.vmem [shape: f32[32,4], index: 1, kind: input, shape index: {}]
  %s2 = inlined_call_operand.vmem [shape: f32[4,128], index: 2, kind: input, shape index: {}]
  %s3 = inlined_call_operand.hbm [shape: f32[14,128], index: 3, kind: output, shape index: {}]
  %s4 = sld [smem:[#allocation0]]
  $region49: #{tpu_custom_call.1} parent=0
    _
  %s6 = ssub.s32 1, %s4
  %s7 = scalar_select 0, %s6, %s4
  $region1: #{tpu_custom_call.1} parent=0
    #allocation3 [shape = 'u8[8192]{0}', space=vmem, size = 0x2000, scoped, tag = 'output window, operand 0']
    #allocation4 [shape = 's32[2]{0}', space=sflag, size = 0x8, scoped, tag = 'scoped memory for tpu_custom_call.1']
    %8 = vsyncpa [#allocation4], 0
    %s9 = scalar_lea.sflag [#allocation4], 1
    %10 = vsyncpa %s9, 0
    loop: start=0, step=1, limit=4
    $region2: #{tpu_custom_call.1} parent=1 // loop_pre_header
      _
    $region3: #{tpu_custom_call.1} parent=1 // loop_header
      %s12 = sphi 0, %s16
      %p13 = scmp.ge.s32.totalorder %s12, 4
      %s19 = sphi 0, %s31
      %s20 = sphi 0, %s27
      %s21 = sphi 0, %s19
      %s22 = sphi 0, %s20
      %s23 = sphi 0, %s21
      %s24 = sphi 0, %s22
      %s34 = sphi 0, %s36
      %s37 = sphi 0, %s34
      %s38 = sphi 0, %s37
      %s54 = sphi 0, %s38
      %s58 = sphi 0, %s58
      %s60 = sphi 0, %s58
      %s61 = sphi 0, %s60
      %s75 = sphi 0, %s61
      %s81 = sphi 0, %s83
      %s84 = sphi 0, %s81
      %s85 = sphi 0, %s84
      %s101 = sphi 0, %s85
      %s109 = sphi 0, %s111
      %s112 = sphi 0, %s109
      %s113 = sphi 0, %s112
      %s129 = sphi 0, %s113
    $region4: #{tpu_custom_call.1} parent=1 // loop_header_branch
      %15 = sbr.rel (%p13) target = $region8
    $region5: #{tpu_custom_call.1} parent=1 // loop_body
      %s17 = ssub.s32 %s12, 1
      %s18 = ssub.s32 %s12, 2
      %s25 = sadd.s32 1, %s20
      %p26 = scmp.ge.s32.totalorder %s25, 1
      %s27 = scalar_select %p26, 0, %s25
      %s28 = sadd.s32 1, %s19
      %s29 = scalar_select %p26, %s28, %s19
      %p30 = scmp.ge.s32.totalorder %s29, 2
      %s31 = scalar_select %p30, 0, %s29
      %s32 = ssub.s32 %s19, %s31
      %p33 = scmp.eq.s32.totalorder %s32, 0
      %s35 = sadd.s32 %s34, 1
      %s36 = scalar_select %p33, %s34, %s35
      %p39 = pneg %p33
      %p40 = scmp.eq.s32.totalorder %s12, 1
      %p41 = por %p39, %p40
      %p42 = scmp.ne.s32.totalorder %s34, %s37
      %p43 = scmp.eq.s32.totalorder %s12, 0
      %p44 = por %p42, %p43
      %p45 = scmp.ne.s32.totalorder %s34, %s37
      %p46 = scmp.eq.s32.totalorder %s17, 1
      %p47 = por %p45, %p46
      %p48 = scmp.ne.s32.totalorder %s37, %s38
      %p49 = scmp.eq.s32.totalorder %s17, 0
      %p50 = por %p48, %p49
      %p51 = scmp.ne.s32.totalorder %s37, %s38
      %p52 = scmp.eq.s32.totalorder %s18, 1
      %p53 = por %p51, %p52
      %p55 = scmp.ne.s32.totalorder %s38, %s54
      %p56 = scmp.eq.s32.totalorder %s18, 0
      %p57 = por %p55, %p56
      %s59 = sadd.s32 %s58, 1
      %p62 = scmp.eq.s32.totalorder %s12, 1
      %p63 = scmp.ne.s32.totalorder %s58, %s60
      %p64 = scmp.eq.s32.totalorder %s12, 0
      %p65 = por %p63, %p64
      %p66 = scmp.ne.s32.totalorder %s58, %s60
      %p67 = scmp.eq.s32.totalorder %s17, 1
      %p68 = por %p66, %p67
      %p69 = scmp.ne.s32.totalorder %s60, %s61
      %p70 = scmp.eq.s32.totalorder %s17, 0
      %p71 = por %p69, %p70
      %p72 = scmp.ne.s32.totalorder %s60, %s61
      %p73 = scmp.eq.s32.totalorder %s18, 1
      %p74 = por %p72, %p73
      %p76 = scmp.ne.s32.totalorder %s61, %s75
      %p77 = scmp.eq.s32.totalorder %s18, 0
      %p78 = por %p76, %p77
      %s79 = ssub.s32 %s20, %s27
      %p80 = scmp.eq.s32.totalorder %s79, 0
      %s82 = sadd.s32 %s81, 1
      %s83 = scalar_select %p80, %s81, %s82
      %p86 = pneg %p80
      %p87 = scmp.eq.s32.totalorder %s12, 1
      %p88 = por %p86, %p87
      %p89 = scmp.ne.s32.totalorder %s81, %s84
      %p90 = scmp.eq.s32.totalorder %s12, 0
      %p91 = por %p89, %p90
      %p92 = scmp.ne.s32.totalorder %s81, %s84
      %p93 = scmp.eq.s32.totalorder %s17, 1
      %p94 = por %p92, %p93
      %p95 = scmp.ne.s32.totalorder %s84, %s85
      %p96 = scmp.eq.s32.totalorder %s17, 0
      %p97 = por %p95, %p96
      %p98 = scmp.ne.s32.totalorder %s84, %s85
      %p99 = scmp.eq.s32.totalorder %s18, 1
      %p100 = por %p98, %p99
      %p102 = scmp.ne.s32.totalorder %s85, %s101
      %p103 = scmp.eq.s32.totalorder %s18, 0
      %p104 = por %p102, %p103
      %s105 = ssub.s32 %s19, %s31
      %s106 = ssub.s32 %s20, %s27
      %s107 = sor.u32 %s105, %s106
      %p108 = scmp.eq.s32.totalorder %s107, 0
      %s110 = sadd.s32 %s109, 1
      %s111 = scalar_select %p108, %s109, %s110
      %p114 = pneg %p108
      %p115 = scmp.eq.s32.totalorder %s12, 1
      %p116 = por %p114, %p115
      %p117 = scmp.ne.s32.totalorder %s109, %s112
      %p118 = scmp.eq.s32.totalorder %s12, 0
      %p119 = por %p117, %p118
      %p120 = scmp.ne.s32.totalorder %s109, %s112
      %p121 = scmp.eq.s32.totalorder %s17, 1
      %p122 = por %p120, %p121
      %p123 = scmp.ne.s32.totalorder %s112, %s113
      %p124 = scmp.eq.s32.totalorder %s17, 0
      %p125 = por %p123, %p124
      %p126 = scmp.ne.s32.totalorder %s112, %s113
      %p127 = scmp.eq.s32.totalorder %s18, 1
      %p128 = por %p126, %p127
      %p130 = scmp.ne.s32.totalorder %s113, %s129
      %p131 = scmp.eq.s32.totalorder %s18, 0
      %p132 = por %p130, %p131
      %p133 = scmp.le.s32.totalorder 1, %s12
      %p134 = scmp.lt.s32.totalorder %s12, 3
      %p135 = pnand %p133, %p134
      %p136 = pneg %p135
      // Predicated region
      $region9: #{tpu_custom_call.1} parent=5 // pred_check
        _
      $region10: #{tpu_custom_call.1} parent=5 // pred_check_branch
        %138 = sbr.rel (%p135) target = $region12
      $region11: #{tpu_custom_call.1} parent=5 // pred_region
        %s139 = ssub.s32 %s12, 1
        // Predicated region
        $region13: #{tpu_custom_call.1} parent=11 // pred_check
          %p140 = pneg %p71
        $region14: #{tpu_custom_call.1} parent=11 // pred_check_branch
          %142 = sbr.rel (%p140) target = $region16
        $region15: #{tpu_custom_call.1} parent=11 // pred_region
          _
        $region16: #{tpu_custom_call.1} parent=11 // pred_fallthru
          _
        // Predicated region
        $region17: #{tpu_custom_call.1} parent=11 // pred_check
          %p143 = pneg %p97
        $region18: #{tpu_custom_call.1} parent=11 // pred_check_branch
          %145 = sbr.rel (%p143) target = $region20
        $region19: #{tpu_custom_call.1} parent=11 // pred_region
          %p146 = scmp.lt.s32.totalorder %s22, 0
          %s147 = scalar_select %p146, %s22, 0
          %s148 = smul.addr %s147, 4
          %s149 = scalar_lea.vmem %s2, %s148
        $region20: #{tpu_custom_call.1} parent=11 // pred_fallthru
          _
      $region12: #{tpu_custom_call.1} parent=5 // pred_fallthru
        _
      %p150 = scmp.lt.s32.totalorder %s12, 2
      // Predicated region
      $region21: #{tpu_custom_call.1} parent=5 // pred_check
        %p151 = pneg %p150
      $region22: #{tpu_custom_call.1} parent=5 // pred_check_branch
        %153 = sbr.rel (%p151) target = $region24
      $region23: #{tpu_custom_call.1} parent=5 // pred_region
        // Predicated region
        $region25: #{tpu_custom_call.1} parent=23 // pred_check
          %p154 = pneg %p44
        $region26: #{tpu_custom_call.1} parent=23 // pred_check_branch
          %156 = sbr.rel (%p154) target = $region28
        $region27: #{tpu_custom_call.1} parent=23 // pred_region
          %p157 = scmp.lt.s32.totalorder %s19, 1
          %s158 = scalar_select %p157, %s19, 1
          %s159 = smul.addr %s158, 8
          %s160 = scalar_lea.vmem %s0, %s159
        $region28: #{tpu_custom_call.1} parent=23 // pred_fallthru
          _
      $region24: #{tpu_custom_call.1} parent=5 // pred_fallthru
        _
      %p161 = scmp.le.s32.totalorder 1, %s12
      %p162 = scmp.lt.s32.totalorder %s12, 3
      %p163 = pnand %p161, %p162
      %p164 = pneg %p163
      // Predicated region
      $region29: #{tpu_custom_call.1} parent=5 // pred_check
        _
      $region30: #{tpu_custom_call.1} parent=5 // pred_check_branch
        %166 = sbr.rel (%p163) target = $region32
      $region31: #{tpu_custom_call.1} parent=5 // pred_region
        %s167 = ssub.s32 %s12, 1
        %p168 = scmp.lt.s32.totalorder %s21, 1
        %s169 = scalar_select %p168, %s21, 1
        %s170 = smul.addr %s169, 8
        %s171 = scalar_lea.vmem %s0, %s170
        %p172 = pneg %p50
        %p173 = pneg %p47
        %p174 = pneg %p71
        %p175 = pneg %p68
        %p176 = scmp.lt.s32.totalorder %s22, 0
        %s177 = scalar_select %p176, %s22, 0
        %s178 = smul.addr %s177, 4
        %s179 = scalar_lea.vmem %s2, %s178
        %p180 = pneg %p97
        %p181 = pneg %p94
        %p182 = pneg %p125
        %p183 = pneg %p122
        %s184 = sand.u32 %s112, 1
        %s185 = scalar_lea.sflag [#allocation4], %s184
        %s186 = sand.u32 %s112, 1
        %s187 = smul.addr %s186, 8
        %s188 = scalar_lea.vmem [#allocation3], %s187
        %p189 = scmp.lt.s32.totalorder %s21, 1
        %s190 = scalar_select %p189, %s21, 1
        %s191 = smul.addr %s190, 8
        %s192 = scalar_lea.vmem %s0, %s191
        %p193 = scmp.lt.s32.totalorder %s22, 0
        %s194 = scalar_select %p193, %s22, 0
        %s195 = smul.addr %s194, 4
        %s196 = scalar_lea.vmem %s2, %s195
        %p197 = scmp.eq.s32.totalorder %s22, 0
        // Predicated region
        $region33: #{tpu_custom_call.1} parent=31 // pred_check
          %p198 = pneg %p197
        $region34: #{tpu_custom_call.1} parent=31 // pred_check_branch
          %200 = sbr.rel (%p198) target = $region36
        $region35: #{tpu_custom_call.1} parent=31 // pred_region
          %v201 = vld [vmem:[%s192] sm:$0xff]
          %v202 = vld [vmem:[%s1] sm:$0xff]
          %v203 = vld [vmem:[%s1 + $0x8] sm:$0xff]
          %v204 = vld [vmem:[%s1 + $0x10] sm:$0xff]
          %v205 = vld [vmem:[%s1 + $0x18] sm:$0xff]
          %vm206 = vcmask 261120
          %v208 = vsel %vm206, %v201, 0
          %210 = vmatprep.subr.mxu0 0.0
          %211 = vmatpush1.msra.mxu0 %v202
          %212 = vmatprep.subr.mxu0 0.0
          %213 = vmatpush1.msra.mxu0 %v203
          %214 = vmatprep.subr.mxu0 0.0
          %215 = vmatpush1.msra.mxu0 %v204
          %216 = vmatprep.subr.mxu0 0.0
          %217 = vmatpush1.msra.mxu0 %v205
          %218 = vmatprep.subr.mxu0 0.0
          %219 = vmatpush1.msra.mxu0 0.0
          %220 = vmatprep.subr.mxu0 0.0
          %221 = vmatpush1.msra.mxu0 0.0
          %222 = vmatprep.subr.mxu0 0.0
          %223 = vmatpush1.msra.mxu0 0.0
          %224 = vmatprep.subr.mxu0 0.0
          %225 = vmatpush1.msra.mxu0 0.0
          %226 = vmatprep.subr.mxu0 0.0
          %227 = vmatpush1.msra.mxu0 0.0
          %228 = vmatprep.subr.mxu0 0.0
          %229 = vmatpush1.msra.mxu0 0.0
          %230 = vmatprep.subr.mxu0 0.0
          %231 = vmatpush1.msra.mxu0 0.0
          %232 = vmatprep.subr.mxu0 0.0
          %233 = vmatpush1.msra.mxu0 0.0
          %234 = vmatprep.subr.mxu0 0.0
          %235 = vmatpush1.msra.mxu0 0.0
          %236 = vmatprep.subr.mxu0 0.0
          %237 = vmatpush1.msra.mxu0 0.0
          %238 = vmatprep.subr.mxu0 0.0
          %239 = vmatpush1.msra.mxu0 0.0
          %240 = vmatprep.subr.mxu0 0.0
          %241 = vmatpush1.msra.mxu0 0.0
          %242 = vmatprep.subr.mxu0 0.0
          %243 = vmatpush1.msra.mxu0 0.0
          %244 = vmatprep.subr.mxu0 0.0
          %245 = vmatpush1.msra.mxu0 0.0
          %246 = vmatprep.subr.mxu0 0.0
          %247 = vmatpush1.msra.mxu0 0.0
          %248 = vmatprep.subr.mxu0 0.0
          %249 = vmatpush1.msra.mxu0 0.0
          %250 = vmatprep.subr.mxu0 0.0
          %251 = vmatpush1.msra.mxu0 0.0
          %252 = vmatprep.subr.mxu0 0.0
          %253 = vmatpush1.msra.mxu0 0.0
          %254 = vmatprep.subr.mxu0 0.0
          %255 = vmatpush1.msra.mxu0 0.0
          %256 = vmatprep.subr.mxu0 0.0
          %257 = vmatpush1.msra.mxu0 0.0
          %258 = vmatprep.subr.mxu0 0.0
          %259 = vmatpush1.msra.mxu0 0.0
          %260 = vmatprep.subr.mxu0 0.0
          %261 = vmatpush1.msra.mxu0 0.0
          %262 = vmatprep.subr.mxu0 0.0
          %263 = vmatpush1.msra.mxu0 0.0
          %264 = vmatprep.subr.mxu0 0.0
          %265 = vmatpush1.msra.mxu0 0.0
          %266 = vmatprep.subr.mxu0 0.0
          %267 = vmatpush1.msra.mxu0 0.0
          %268 = vmatprep.subr.mxu0 0.0
          %269 = vmatpush1.msra.mxu0 0.0
          %270 = vmatprep.subr.mxu0 0.0
          %271 = vmatpush1.msra.mxu0 0.0
          %272 = vmatprep.subr.mxu0 0.0
          %273 = vmatpush1.msra.mxu0 0.0
          %274 = vmatprep.mubr.f32.mxu0 0.0
          %275 = vmatmul.mubr.f32.gmra.mrb[0].mxu0 %v208
          %v276 = vpop.f32.mrb[0].mxu0
          %v277 = vadd.f32 0.0, %v276
          %v278 = vpop.f32.mrb[0].mxu0
          %279 = vdwg.mxu0
          %v280 = vmul.f32 %v277, 2.0
          %vm281 = vcmask 31744
          %282 = vst.msk [vmem:[#allocation2] sm:$0xff] %vm281, %v280
        $region36: #{tpu_custom_call.1} parent=31 // pred_fallthru
          _
        %v283 = vld [vmem:[#allocation2] sm:$0xff]
        %v284 = vld [vmem:[%s196] sm:$0xf]
        %vm285 = vcmask 31744
        %v287 = vsel %vm285, %v283, 0
        %vm289 = vcmask 1043456
        %v291 = vsel %vm289, %v284, 0
        %293 = vmatprep.subr.mxu0 0.0
        %294 = vmatpush1.msra.mxu0 %v291
        %295 = vmatprep.subr.mxu0 0.0
        %296 = vmatpush1.msra.mxu0 0.0
        %297 = vmatprep.subr.mxu0 0.0
        %298 = vmatpush1.msra.mxu0 0.0
        %299 = vmatprep.subr.mxu0 0.0
        %300 = vmatpush1.msra.mxu0 0.0
        %301 = vmatprep.subr.mxu0 0.0
        %302 = vmatpush1.msra.mxu0 0.0
        %303 = vmatprep.subr.mxu0 0.0
        %304 = vmatpush1.msra.mxu0 0.0
        %305 = vmatprep.subr.mxu0 0.0
        %306 = vmatpush1.msra.mxu0 0.0
        %307 = vmatprep.subr.mxu0 0.0
        %308 = vmatpush1.msra.mxu0 0.0
        %309 = vmatprep.subr.mxu0 0.0
        %310 = vmatpush1.msra.mxu0 0.0
        %311 = vmatprep.subr.mxu0 0.0
        %312 = vmatpush1.msra.mxu0 0.0
        %313 = vmatprep.subr.mxu0 0.0
        %314 = vmatpush1.msra.mxu0 0.0
        %315 = vmatprep.subr.mxu0 0.0
        %316 = vmatpush1.msra.mxu0 0.0
        %317 = vmatprep.subr.mxu0 0.0
        %318 = vmatpush1.msra.mxu0 0.0
        %319 = vmatprep.subr.mxu0 0.0
        %320 = vmatpush1.msra.mxu0 0.0
        %321 = vmatprep.subr.mxu0 0.0
        %322 = vmatpush1.msra.mxu0 0.0
        %323 = vmatprep.subr.mxu0 0.0
        %324 = vmatpush1.msra.mxu0 0.0
        %325 = vmatprep.subr.mxu0 0.0
        %326 = vmatpush1.msra.mxu0 0.0
        %327 = vmatprep.subr.mxu0 0.0
        %328 = vmatpush1.msra.mxu0 0.0
        %329 = vmatprep.subr.mxu0 0.0
        %330 = vmatpush1.msra.mxu0 0.0
        %331 = vmatprep.subr.mxu0 0.0
        %332 = vmatpush1.msra.mxu0 0.0
        %333 = vmatprep.subr.mxu0 0.0
        %334 = vmatpush1.msra.mxu0 0.0
        %335 = vmatprep.subr.mxu0 0.0
        %336 = vmatpush1.msra.mxu0 0.0
        %337 = vmatprep.subr.mxu0 0.0
        %338 = vmatpush1.msra.mxu0 0.0
        %339 = vmatprep.subr.mxu0 0.0
        %340 = vmatpush1.msra.mxu0 0.0
        %341 = vmatprep.subr.mxu0 0.0
        %342 = vmatpush1.msra.mxu0 0.0
        %343 = vmatprep.subr.mxu0 0.0
        %344 = vmatpush1.msra.mxu0 0.0
        %345 = vmatprep.subr.mxu0 0.0
        %346 = vmatpush1.msra.mxu0 0.0
        %347 = vmatprep.subr.mxu0 0.0
        %348 = vmatpush1.msra.mxu0 0.0
        %349 = vmatprep.subr.mxu0 0.0
        %350 = vmatpush1.msra.mxu0 0.0
        %351 = vmatprep.subr.mxu0 0.0
        %352 = vmatpush1.msra.mxu0 0.0
        %353 = vmatprep.subr.mxu0 0.0
        %354 = vmatpush1.msra.mxu0 0.0
        %355 = vmatprep.subr.mxu0 0.0
        %356 = vmatpush1.msra.mxu0 0.0
        %357 = vmatprep.mubr.f32.mxu0 0.0
        %358 = vmatmul.mubr.f32.gmra.mrb[0].mxu0 %v287
        %v359 = vpop.f32.mrb[0].mxu0
        %v360 = vadd.f32 0.0, %v359
        %v361 = vpop.f32.mrb[0].mxu0
        %362 = vdwg.mxu0
        %363 = vst [vmem:[%s188] sm:$0xff] %v360
        %s364 = sand.u32 %s112, 1
        %s365 = scalar_lea.sflag [#allocation4], %s364
        %s366 = sand.u32 %s112, 1
        %s367 = smul.addr %s366, 8
        %s368 = scalar_lea.vmem [#allocation3], %s367
        // Predicated region
        $region37: #{tpu_custom_call.1} parent=31 // pred_check
          %p369 = pneg %p122
        $region38: #{tpu_custom_call.1} parent=31 // pred_check_branch
          %371 = sbr.rel (%p369) target = $region40
        $region39: #{tpu_custom_call.1} parent=31 // pred_region
          %s373 = ssub.s32 128, 128
          %374 = vsyncadd %s365, %s373
          %s375 = sadd.s32 %s22, %s21
          %s376 = smul.addr %s375, 128
          %s377 = scalar_lea.hbm %s3, %s376
          %s379 = sshll.u32 %s368, 4
          %s380 = int_to_ptr.vmem [resolvable:$true] %s379
          %382 = dma.vmem_to_hbm [thread:$0]  %s380, 128, %s377, %s365
        $region40: #{tpu_custom_call.1} parent=31 // pred_fallthru
          _
      $region32: #{tpu_custom_call.1} parent=5 // pred_fallthru
        _
      %p383 = scmp.le.s32.totalorder 2, %s12
      // Predicated region
      $region41: #{tpu_custom_call.1} parent=5 // pred_check
        %p384 = pneg %p383
      $region42: #{tpu_custom_call.1} parent=5 // pred_check_branch
        %386 = sbr.rel (%p384) target = $region44
      $region43: #{tpu_custom_call.1} parent=5 // pred_region
        %s387 = ssub.s32 %s12, 2
        // Predicated region
        $region45: #{tpu_custom_call.1} parent=43 // pred_check
          %p388 = pneg %p128
        $region46: #{tpu_custom_call.1} parent=43 // pred_check_branch
          %390 = sbr.rel (%p388) target = $region48
        $region47: #{tpu_custom_call.1} parent=43 // pred_region
          %s391 = sand.u32 %s113, 1
          %s392 = scalar_lea.sflag [#allocation4], %s391
          %s393 = sand.u32 %s113, 1
          %s394 = smul.addr %s393, 8
          %s395 = scalar_lea.vmem [#allocation3], %s394
          %396 = dma.done %s392, 128
        $region48: #{tpu_custom_call.1} parent=43 // pred_fallthru
          _
      $region44: #{tpu_custom_call.1} parent=5 // pred_fallthru
        _
    $region6: #{tpu_custom_call.1} parent=1 // loop_footer
      %s16 = sadd.s32 1, %s12
    $region7: #{tpu_custom_call.1} parent=1 // loop_footer_branch
      %11 = sbr.rel target = $region3
    $region8: #{tpu_custom_call.1} parent=1 // loop_exit
      _
    %397 = vsyncpa [#allocation4], 1
    %s398 = scalar_lea.sflag [#allocation4], 1
    %399 = vsyncpa %s398, 1

</llo_original>
